<compile_context>
chip_gen: v7x
topology: tpu7x:2x2x1
jax: 0.10.0
libtpu: 0.0.40
codegen_flags: <defaults>
</compile_context>

<pallas_src>
import functools

import jax
import jax.numpy as jnp
from jax.experimental import pallas as pl
from jax.experimental.pallas import tpu as pltpu


def _mha_kernel(pep_ref, mhc_ref, m_ref, uv_ref, out_ref, *,
                hidden, n_heads, seq_len, batch_tile):
    TB, L, H = batch_tile, seq_len, hidden
    inv_scale = 1.0 / (H * n_heads)

    # f32 everywhere for the elementwise path (exact for the 1e-4 check and
    # required on v5e, which has no bf16 VPU/EUP).  bf16 inputs upcast here.
    pep = pep_ref[...].astype(jnp.float32)            # (TB, L, H)
    mhc = mhc_ref[...].astype(jnp.float32)            # (TB, L, H)
    m_fold = m_ref[...]                               # (H, H)  = Wp^T Wm
    uv = uv_ref[...]                                  # (2, H)
    u = uv[0:1, :].reshape(1, 1, H)                   # Wp^T bm
    v = uv[1:2, :].reshape(1, 1, H)                   # Wm^T bp

    # scores[b,q,k] = (pep_q M mhc_k^T + pep_q.u + mhc_k.v) / (H*n_heads)
    # (bp.bm constant dropped: it cancels in the flattened softmax.)
    # The leading-dim merge is a free view: L == 8 == f32 sublane tile.
    pep2d = pep.reshape(TB * L, H)
    pep_m = jnp.dot(pep2d, m_fold,
                    preferred_element_type=jnp.float32).reshape(TB, L, H)

    scores = jnp.einsum('bqd,bkd->bqk', pep_m, mhc,
                        preferred_element_type=jnp.float32)          # (TB, L, L)
    pu = jnp.sum(pep * u, axis=-1)                                    # (TB, L)
    mv = jnp.sum(mhc * v, axis=-1)                                    # (TB, L)
    scores = (scores + pu[:, :, None] + mv[:, None, :]) * inv_scale

    # Softmax over the flattened (L*L) map == joint max/sum over both trailing
    # axes; avoids any in-kernel (TB,L,L)->(TB,L*L) relayout.
    s_max = jnp.max(jnp.max(scores, axis=2, keepdims=True), axis=1, keepdims=True)
    e = jnp.exp(scores - s_max)
    denom = jnp.sum(jnp.sum(e, axis=2, keepdims=True), axis=1, keepdims=True)
    att = e * pl.reciprocal(denom, approx=False)                      # (TB, L, L)

    # output[b,h] = sum_{i,j} (pep[b,j,h] + mhc[b,i,h]) * att[b,i,j]
    col_w = jnp.sum(att, axis=1)                                      # (TB, L) -> weights for pep rows
    row_w = jnp.sum(att, axis=2)                                      # (TB, L) -> weights for mhc rows
    out = (jnp.sum(col_w[:, :, None] * pep, axis=1) +
           jnp.sum(row_w[:, :, None] * mhc, axis=1))                  # (TB, H)

    # H=32 < 128 lanes -> lane-masked store.  Kept deliberately: output bytes
    # are ~1/17 of input bytes; packing 4 rows per 128-lane block would cost a
    # sublane->lane relayout of `out` of comparable size.
    out_ref[...] = out.astype(out_ref.dtype)


def _vmem_budget_bytes():
    """Scoped-VMEM budget with headroom: v5e/v6e (128 MiB physical) -> 96 MiB,
    v7x (64 MiB per core) -> 48 MiB, conservative 32 MiB fallback."""
    try:
        phys = int(pltpu.get_tpu_info().vmem_capacity_bytes)
    except Exception:
        return 32 * 1024 * 1024
    return min(96 * 1024 * 1024, (phys * 3) // 4)


def _pick_batch_tile(B, L, H, vmem_budget):
    """VMEM-budgeted batch tile: double-buffered input blocks plus lane-padded
    f32 intermediates, with a cap so the in-kernel batched einsum keeps a
    moderate batch extent."""
    lanes = max(H, 128)                    # f32 VMEM tiles are 128 lanes wide
    per_row = 10 * L * lanes * 4           # 2 inputs x 2 bufs + loads + pepM + scores/e/att
    tb = max(8, min(512, (vmem_budget // 2) // per_row))
    if B <= tb:
        # Ensure >= 2 grid steps when the batch is big enough so the
        # "parallel" grid axis can occupy both v7x TensorCores.
        tb = (B + 1) // 2 if B >= 16 else B
    if tb < B:
        # grid > 1 needs the (TB, H) output block sublane-aligned.
        tb = ((tb + 7) // 8) * 8
    return max(1, tb)


def multi_head_attention(peptide, mhc, w_pep_t, b_pep, w_mhc_t, b_mhc, n_heads,
                         *, batch_tile=None):
    """peptide/mhc: (B, L, H).  w_*_t: (H, H*n_heads) pre-transposed Linear
    weights.  b_*: (1, H*n_heads).  Returns (B, H) float32."""
    B, L, H = peptide.shape
    assert mhc.shape == (B, L, H), "peptide and mhc must share (B, L, H)"

    # Fold the two projections into score-space parameters once on the host
    # (exact algebraic identity; see kernel comment).
    w_pep_t = w_pep_t.astype(jnp.float32)
    w_mhc_t = w_mhc_t.astype(jnp.float32)
    m_fold = w_pep_t @ w_mhc_t.T                                  # (H, H)
    u = w_pep_t @ b_mhc.reshape(-1).astype(jnp.float32)           # (H,)
    v = w_mhc_t @ b_pep.reshape(-1).astype(jnp.float32)           # (H,)
    uv = jnp.stack([u, v], axis=0)                                # (2, H)

    vmem_budget = _vmem_budget_bytes()
    TB = batch_tile if batch_tile is not None else _pick_batch_tile(B, L, H, vmem_budget)

    # Pad the batch to a multiple of TB.  Zero rows give a uniform softmax
    # (no NaN) and are sliced off below.
    Bp = pl.cdiv(B, TB) * TB
    if Bp != B:
        pad = Bp - B
        peptide = jnp.pad(peptide, ((0, pad), (0, 0), (0, 0)))
        mhc = jnp.pad(mhc, ((0, pad), (0, 0), (0, 0)))

    grid_b = Bp // TB
    if grid_b > 1 and TB % 8:
        raise ValueError("batch_tile must be a multiple of 8 when it does not "
                         "cover the whole (padded) batch")

    kernel = functools.partial(_mha_kernel, hidden=H, n_heads=n_heads,
                               seq_len=L, batch_tile=TB)

    out = pl.pallas_call(
        kernel,
        out_shape=jax.ShapeDtypeStruct((Bp, H), jnp.float32),
        grid=(grid_b,),
        in_specs=[
            pl.BlockSpec((TB, L, H), lambda b: (b, 0, 0)),   # peptide tile
            pl.BlockSpec((TB, L, H), lambda b: (b, 0, 0)),   # mhc tile
            pl.BlockSpec((H, H), lambda b: (0, 0)),          # folded Wp^T Wm
            pl.BlockSpec((2, H), lambda b: (0, 0)),          # [u; v]
        ],
        out_specs=pl.BlockSpec((TB, H), lambda b: (b, 0)),
        compiler_params=pltpu.CompilerParams(
            dimension_semantics=("parallel",),
            vmem_limit_bytes=vmem_budget),
        # TODO(synk): add pipeline_mode=pl.Buffered(3) on the activation specs
        # if an xprof trace still shows exposed input DMA on v7x.
    )(peptide, mhc, m_fold, uv)

    return out[:B]


def _reference(peptide, mhc, w_pep_t, b_pep, w_mhc_t, b_mhc, n_heads):
    """Pure-JAX transliteration of the PyTorch forward, for verification."""
    B, L, H = peptide.shape
    mhc_s = (mhc @ w_mhc_t + b_mhc).reshape(B, -1, n_heads, H).transpose(0, 2, 1, 3)
    pep_s = (peptide @ w_pep_t + b_pep).reshape(B, -1, n_heads, H).transpose(0, 2, 1, 3)
    scores = jnp.einsum('bnph,bnmh->bnpm', pep_s, mhc_s) / H
    scores = jnp.mean(scores, axis=1)                                # (B, Lp, Lm)
    att = jax.nn.softmax(scores.reshape(B, -1), axis=1).reshape(scores.shape)
    att = att[..., None]                                             # (B, Lp, Lm, 1)
    intermap = peptide[:, None, :, :] + mhc[:, :, None, :]           # (B, Lm, Lp, H)
    return jnp.sum(intermap * att, axis=(1, 2))                      # (B, H)


if __name__ == "__main__":
    B, L, H, N_HEADS = 2, 8, 32, 4
    HN = H * N_HEADS

    key = jax.random.PRNGKey(0)
    k_pep, k_mhc, k_wp, k_wm, k_bp, k_bm = jax.random.split(key, 6)

    peptide = jax.random.normal(k_pep, (B, L, H), dtype=jnp.float32)
    mhc = jax.random.normal(k_mhc, (B, L, H), dtype=jnp.float32)

    # Xavier-uniform init of the (out=H*n, in=H) Linear weights (as in
    # reset_param), stored pre-transposed to (H, H*n).  Bias ~ U(-1/sqrt(H),
    # 1/sqrt(H)) as in torch.nn.Linear's default init.
    xavier_bound = (6.0 / (H + HN)) ** 0.5
    bias_bound = 1.0 / (H ** 0.5)
    w_pep_t = jax.random.uniform(k_wp, (H, HN), jnp.float32, -xavier_bound, xavier_bound)
    w_mhc_t = jax.random.uniform(k_wm, (H, HN), jnp.float32, -xavier_bound, xavier_bound)
    b_pep = jax.random.uniform(k_bp, (1, HN), jnp.float32, -bias_bound, bias_bound)
    b_mhc = jax.random.uniform(k_bm, (1, HN), jnp.float32, -bias_bound, bias_bound)

    out = multi_head_attention(peptide, mhc, w_pep_t, b_pep, w_mhc_t, b_mhc, N_HEADS)
    out = jax.block_until_ready(out)

    ref = _reference(peptide, mhc, w_pep_t, b_pep, w_mhc_t, b_mhc, N_HEADS)
    assert out.shape == (B, H)
    assert jnp.allclose(out, ref, atol=1e-4, rtol=1e-4), (out, ref)

    print("KERNEL_OK")
</pallas_src>

<mosaic_0001>
module attributes {stable_mosaic.version = 11 : i64} {
  func.func @_mha_kernel(%arg0: i32, %arg1: memref<2x8x32xf32, #tpu.memory_space<vmem>>, %arg2: memref<2x8x32xf32, #tpu.memory_space<vmem>>, %arg3: memref<32x32xf32, #tpu.memory_space<vmem>>, %arg4: memref<2x32xf32, #tpu.memory_space<vmem>>, %arg5: memref<2x32xf32, #tpu.memory_space<vmem>>) attributes {dimension_semantics = [#tpu.dimension_semantics<parallel>], iteration_bounds = array<i64: 1>, scalar_prefetch = 0 : i64, scratch_operands = 0 : i64, tpu.core_type = #tpu.core_type<tc>, window_params = [{transform_indices = @transform_0, window_bounds = array<i64: 2, 8, 32>}, {transform_indices = @transform_1, window_bounds = array<i64: 2, 8, 32>}, {pipeline_mode = #tpu.pipeline_mode<synchronous>, transform_indices = @transform_2, window_bounds = array<i64: 32, 32>}, {pipeline_mode = #tpu.pipeline_mode<synchronous>, transform_indices = @transform_3, window_bounds = array<i64: 2, 32>}, {transform_indices = @transform_4, window_bounds = array<i64: 2, 32>}]} {
    %c0 = arith.constant 0 : index
    %c0_0 = arith.constant 0 : index
    %c0_1 = arith.constant 0 : index
    %0 = vector.load %arg1[%c0, %c0_0, %c0_1] : memref<2x8x32xf32, #tpu.memory_space<vmem>>, vector<2x8x32xf32>
    %c0_2 = arith.constant 0 : index
    %c0_3 = arith.constant 0 : index
    %c0_4 = arith.constant 0 : index
    %1 = vector.load %arg2[%c0_2, %c0_3, %c0_4] : memref<2x8x32xf32, #tpu.memory_space<vmem>>, vector<2x8x32xf32>
    %c0_5 = arith.constant 0 : index
    %c0_6 = arith.constant 0 : index
    %2 = vector.load %arg3[%c0_5, %c0_6] : memref<32x32xf32, #tpu.memory_space<vmem>>, vector<32x32xf32>
    %c0_7 = arith.constant 0 : index
    %c0_8 = arith.constant 0 : index
    %3 = vector.load %arg4[%c0_7, %c0_8] : memref<2x32xf32, #tpu.memory_space<vmem>>, vector<2x32xf32>
    %4 = vector.extract_strided_slice %3 {offsets = [0, 0], sizes = [1, 32], strides = [1, 1]} : vector<2x32xf32> to vector<1x32xf32>
    %5 = vector.shape_cast %4 : vector<1x32xf32> to vector<1x1x32xf32>
    %6 = vector.extract_strided_slice %3 {offsets = [1, 0], sizes = [1, 32], strides = [1, 1]} : vector<2x32xf32> to vector<1x32xf32>
    %7 = vector.shape_cast %6 : vector<1x32xf32> to vector<1x1x32xf32>
    %8 = vector.shape_cast %0 : vector<2x8x32xf32> to vector<16x32xf32>
    %cst = arith.constant dense<0.000000e+00> : vector<16x32xf32>
    %9 = tpu.matmul %8, %2, %cst {dimension_numbers = #tpu.dot_dimension_numbers<[1], [0], [0], [1], [0, 0, 1, 1], [], []>} : vector<16x32xf32>, vector<32x32xf32>, vector<16x32xf32> -> vector<16x32xf32>
    %10 = vector.shape_cast %9 : vector<16x32xf32> to vector<2x8x32xf32>
    "tpu.trace_start"() <{level = 10 : i32, message = "bqd,bkd->bqk"}> : () -> ()
    %cst_9 = arith.constant dense<0.000000e+00> : vector<2x8x8xf32>
    %11 = tpu.matmul %10, %1, %cst_9 {dimension_numbers = #tpu.dot_dimension_numbers<[2], [2], [1], [1], [0, 0, 0, 1, 1, 1], [0], [0]>} : vector<2x8x32xf32>, vector<2x8x32xf32>, vector<2x8x8xf32> -> vector<2x8x8xf32>
    "tpu.trace_stop"() : () -> ()
    %12 = vector.broadcast %5 : vector<1x1x32xf32> to vector<2x8x32xf32>
    %13 = arith.mulf %0, %12 : vector<2x8x32xf32>
    %cst_10 = arith.constant dense<0.000000e+00> : vector<2x8xf32>
    %14 = vector.multi_reduction <add>, %13, %cst_10 [2] : vector<2x8x32xf32> to vector<2x8xf32>
    %15 = vector.broadcast %7 : vector<1x1x32xf32> to vector<2x8x32xf32>
    %16 = arith.mulf %1, %15 : vector<2x8x32xf32>
    %cst_11 = arith.constant dense<0.000000e+00> : vector<2x8xf32>
    %17 = vector.multi_reduction <add>, %16, %cst_11 [2] : vector<2x8x32xf32> to vector<2x8xf32>
    %18 = vector.shape_cast %14 : vector<2x8xf32> to vector<2x8x1xf32>
    %19 = vector.broadcast %18 : vector<2x8x1xf32> to vector<2x8x8xf32>
    %20 = arith.addf %11, %19 : vector<2x8x8xf32>
    %21 = vector.shape_cast %17 : vector<2x8xf32> to vector<2x1x8xf32>
    %22 = vector.broadcast %21 : vector<2x1x8xf32> to vector<2x8x8xf32>
    %23 = arith.addf %20, %22 : vector<2x8x8xf32>
    %cst_12 = arith.constant 7.812500e-03 : f32
    %24 = vector.broadcast %cst_12 : f32 to vector<2x8x8xf32>
    %25 = arith.mulf %23, %24 : vector<2x8x8xf32>
    %cst_13 = arith.constant dense<0xFF800000> : vector<2x8xf32>
    %26 = vector.multi_reduction <maximumf>, %25, %cst_13 [2] : vector<2x8x8xf32> to vector<2x8xf32>
    %27 = vector.shape_cast %26 : vector<2x8xf32> to vector<2x8x1xf32>
    %cst_14 = arith.constant dense<0xFF800000> : vector<2x1xf32>
    %28 = vector.multi_reduction <maximumf>, %27, %cst_14 [1] : vector<2x8x1xf32> to vector<2x1xf32>
    %29 = vector.shape_cast %28 : vector<2x1xf32> to vector<2x1x1xf32>
    %30 = vector.broadcast %29 : vector<2x1x1xf32> to vector<2x8x8xf32>
    %31 = arith.subf %25, %30 : vector<2x8x8xf32>
    %32 = math.exp %31 : vector<2x8x8xf32>
    %cst_15 = arith.constant dense<0.000000e+00> : vector<2x8xf32>
    %33 = vector.multi_reduction <add>, %32, %cst_15 [2] : vector<2x8x8xf32> to vector<2x8xf32>
    %34 = vector.shape_cast %33 : vector<2x8xf32> to vector<2x8x1xf32>
    %cst_16 = arith.constant dense<0.000000e+00> : vector<2x1xf32>
    %35 = vector.multi_reduction <add>, %34, %cst_16 [1] : vector<2x8x1xf32> to vector<2x1xf32>
    %36 = vector.shape_cast %35 : vector<2x1xf32> to vector<2x1x1xf32>
    %37 = tpu.reciprocal %36 : vector<2x1x1xf32> -> vector<2x1x1xf32>
    %38 = vector.broadcast %37 : vector<2x1x1xf32> to vector<2x8x8xf32>
    %39 = arith.mulf %32, %38 : vector<2x8x8xf32>
    %cst_17 = arith.constant dense<0.000000e+00> : vector<2x8xf32>
    %40 = vector.multi_reduction <add>, %39, %cst_17 [1] : vector<2x8x8xf32> to vector<2x8xf32>
    %cst_18 = arith.constant dense<0.000000e+00> : vector<2x8xf32>
    %41 = vector.multi_reduction <add>, %39, %cst_18 [2] : vector<2x8x8xf32> to vector<2x8xf32>
    %42 = vector.shape_cast %40 : vector<2x8xf32> to vector<2x8x1xf32>
    %43 = vector.broadcast %42 : vector<2x8x1xf32> to vector<2x8x32xf32>
    %44 = arith.mulf %43, %0 : vector<2x8x32xf32>
    %cst_19 = arith.constant dense<0.000000e+00> : vector<2x32xf32>
    %45 = vector.multi_reduction <add>, %44, %cst_19 [1] : vector<2x8x32xf32> to vector<2x32xf32>
    %46 = vector.shape_cast %41 : vector<2x8xf32> to vector<2x8x1xf32>
    %47 = vector.broadcast %46 : vector<2x8x1xf32> to vector<2x8x32xf32>
    %48 = arith.mulf %47, %1 : vector<2x8x32xf32>
    %cst_20 = arith.constant dense<0.000000e+00> : vector<2x32xf32>
    %49 = vector.multi_reduction <add>, %48, %cst_20 [1] : vector<2x8x32xf32> to vector<2x32xf32>
    %50 = arith.addf %45, %49 : vector<2x32xf32>
    %c0_21 = arith.constant 0 : index
    %c0_22 = arith.constant 0 : index
    %51 = vector.load %arg5[%c0_21, %c0_22] : memref<2x32xf32, #tpu.memory_space<vmem>>, vector<2x32xf32>
    tpu.vector_store %arg5[%c0_21, %c0_22], %50 {strides = array<i32>} : memref<2x32xf32, #tpu.memory_space<vmem>>, vector<2x32xf32>,
    return
  }
  func.func @transform_0(%arg0: i32) -> (i32, i32, i32) {
    %c0_i32 = arith.constant 0 : i32
    %c0_i32_0 = arith.constant 0 : i32
    %c0_i32_1 = arith.constant 0 : i32
    return %arg0, %c0_i32, %c0_i32_0 : i32, i32, i32
  }
  func.func @transform_1(%arg0: i32) -> (i32, i32, i32) {
    %c0_i32 = arith.constant 0 : i32
    %c0_i32_0 = arith.constant 0 : i32
    %c0_i32_1 = arith.constant 0 : i32
    return %arg0, %c0_i32, %c0_i32_0 : i32, i32, i32
  }
  func.func @transform_2(%arg0: i32) -> (i32, i32) {
    %c0_i32 = arith.constant 0 : i32
    %c0_i32_0 = arith.constant 0 : i32
    %c0_i32_1 = arith.constant 0 : i32
    return %c0_i32, %c0_i32_0 : i32, i32
  }
  func.func @transform_3(%arg0: i32) -> (i32, i32) {
    %c0_i32 = arith.constant 0 : i32
    %c0_i32_0 = arith.constant 0 : i32
    %c0_i32_1 = arith.constant 0 : i32
    return %c0_i32, %c0_i32_0 : i32, i32
  }
  func.func @transform_4(%arg0: i32) -> (i32, i32) {
    %c0_i32 = arith.constant 0 : i32
    %c0_i32_0 = arith.constant 0 : i32
    return %arg0, %c0_i32 : i32, i32
  }
}

</mosaic_0001>

<llo_original>
// kernel: tpu_custom_call.1
$region0: #{tpu_custom_call.1}
  #allocation0 [shape = 'u32[]', space=smem, size = 0x4, offset = 0x4, fixed_abs, tag = 'smem constant byte address 0x4 - core index']
  #allocation1 [shape = 'u32[144,128]{1,0:T(1,128)}', space=vmem, size = 0x12000, scoped, tag = 'internal scratch']
  %s0 = inlined_call_operand.hbm [shape: f32[2,8,32], index: 0, kind: input, shape index: {}]
  %s1 = inlined_call_operand.hbm [shape: f32[2,8,32], index: 1, kind: input, shape index: {}]
  %s2 = inlined_call_operand.hbm [shape: f32[32,32], index: 2, kind: input, shape index: {}]
  %s3 = inlined_call_operand.vmem [shape: f32[2,32], index: 3, kind: input, shape index: {}]
  %s4 = inlined_call_operand.hbm [shape: f32[2,32], index: 4, kind: output, shape index: {}]
  %s5 = sld [smem:[#allocation0]]
  $region38: #{tpu_custom_call.1} parent=0
    _
  %s7 = ssub.s32 1, %s5
  %s8 = scalar_select 0, %s7, %s5
  $region1: #{tpu_custom_call.1} parent=0
    #allocation2 [shape = 'u8[8192]{0}', space=vmem, size = 0x2000, scoped, tag = 'input window, operand 0, single buffered']
    #allocation3 [shape = 's32[1]{0}', space=sflag, size = 0x4, scoped, tag = 'scoped memory for tpu_custom_call.1']
    #allocation4 [shape = 's32[1]{0}', space=sflag, size = 0x4, scoped, tag = 'scoped memory for tpu_custom_call.1']
    #allocation5 [shape = 'u8[8192]{0}', space=vmem, size = 0x2000, scoped, tag = 'input window, operand 1, single buffered']
    #allocation6 [shape = 's32[1]{0}', space=sflag, size = 0x4, scoped, tag = 'scoped memory for tpu_custom_call.1']
    #allocation7 [shape = 'u8[16384]{0}', space=vmem, size = 0x4000, scoped, tag = 'input window, operand 2, single buffered']
    #allocation8 [shape = 'u8[1024]{0}', space=vmem, size = 0x400, scoped, tag = 'output window, operand 0, single buffered']
    %9 = vsyncpa [#allocation3], 0
    %10 = vsyncpa [#allocation6], 0
    %11 = vsyncpa [#allocation4], 0
    // Predicated region
    $region2: #{tpu_custom_call.1} parent=1 // pred_check
      _
    $region3: #{tpu_custom_call.1} parent=1 // pred_check_branch
      %13 = sbr.rel (0) target = $region5
    $region4: #{tpu_custom_call.1} parent=1 // pred_region
      %s15 = ssub.s32 256, 256
      %16 = vsyncadd [#allocation3], %s15
      %s17 = sshll.u32 [#allocation2], 4
      %s18 = int_to_ptr.vmem [resolvable:$true] %s17
      %23 = dma.hbm_to_vmem [thread:$0]  %s0, 256, %s18, [#allocation3], 128, 128, 8
    $region5: #{tpu_custom_call.1} parent=1 // pred_fallthru
      _
    // Predicated region
    $region6: #{tpu_custom_call.1} parent=1 // pred_check
      _
    $region7: #{tpu_custom_call.1} parent=1 // pred_check_branch
      %25 = sbr.rel (0) target = $region9
    $region8: #{tpu_custom_call.1} parent=1 // pred_region
      %s27 = ssub.s32 256, 256
      %28 = vsyncadd [#allocation6], %s27
      %s29 = sshll.u32 [#allocation5], 4
      %s30 = int_to_ptr.vmem [resolvable:$true] %s29
      %35 = dma.hbm_to_vmem [thread:$0]  %s1, 256, %s30, [#allocation6], 128, 128, 8
    $region9: #{tpu_custom_call.1} parent=1 // pred_fallthru
      _
    // Predicated region
    $region10: #{tpu_custom_call.1} parent=1 // pred_check
      _
    $region11: #{tpu_custom_call.1} parent=1 // pred_check_branch
      %37 = sbr.rel (0) target = $region13
    $region12: #{tpu_custom_call.1} parent=1 // pred_region
      %s39 = ssub.s32 512, 512
      %40 = vsyncadd [#allocation6], %s39
      %s41 = sshll.u32 [#allocation7], 4
      %s42 = int_to_ptr.vmem [resolvable:$true] %s41
      %47 = dma.hbm_to_vmem [thread:$0]  %s2, 512, %s42, [#allocation6], 128, 128, 8
    $region13: #{tpu_custom_call.1} parent=1 // pred_fallthru
      _
    // Predicated region
    $region14: #{tpu_custom_call.1} parent=1 // pred_check
      _
    $region15: #{tpu_custom_call.1} parent=1 // pred_check_branch
      %49 = sbr.rel (0) target = $region17
    $region16: #{tpu_custom_call.1} parent=1 // pred_region
      _
    $region17: #{tpu_custom_call.1} parent=1 // pred_fallthru
      _
    // Predicated region
    $region18: #{tpu_custom_call.1} parent=1 // pred_check
      _
    $region19: #{tpu_custom_call.1} parent=1 // pred_check_branch
      %51 = sbr.rel (0) target = $region21
    $region20: #{tpu_custom_call.1} parent=1 // pred_region
      %52 = dma.done [#allocation3], 256
    $region21: #{tpu_custom_call.1} parent=1 // pred_fallthru
      _
    // Predicated region
    $region22: #{tpu_custom_call.1} parent=1 // pred_check
      _
    $region23: #{tpu_custom_call.1} parent=1 // pred_check_branch
      %54 = sbr.rel (0) target = $region25
    $region24: #{tpu_custom_call.1} parent=1 // pred_region
      %55 = dma.done [#allocation6], 256
    $region25: #{tpu_custom_call.1} parent=1 // pred_fallthru
      _
    // Predicated region
    $region26: #{tpu_custom_call.1} parent=1 // pred_check
      _
    $region27: #{tpu_custom_call.1} parent=1 // pred_check_branch
      %57 = sbr.rel (0) target = $region29
    $region28: #{tpu_custom_call.1} parent=1 // pred_region
      %58 = dma.done [#allocation6], 512
    $region29: #{tpu_custom_call.1} parent=1 // pred_fallthru
      _
    %v59 = vld [vmem:[#allocation2] sm:$0xff]
    %v60 = vld [vmem:[#allocation2 + $0x8] sm:$0xff]
    %v61 = vld [vmem:[#allocation5] sm:$0xff]
    %v62 = vld [vmem:[#allocation5 + $0x8] sm:$0xff]
    %v63 = vld [vmem:[#allocation7] sm:$0xff]
    %v64 = vld [vmem:[#allocation7 + $0x8] sm:$0xff]
    %v65 = vld [vmem:[#allocation7 + $0x10] sm:$0xff]
    %v66 = vld [vmem:[#allocation7 + $0x18] sm:$0xff]
    %v67 = vld [vmem:[%s3] sm:$0x3]
    %vm68 = vcmask 261120
    %v70 = vsel %vm68, %v59, 0
    %v73 = vsel %vm68, %v60, 0
    %75 = vmatprep.subr.mxu0 0.0
    %76 = vmatpush1.msra.mxu0 %v63
    %77 = vmatprep.subr.mxu0 0.0
    %78 = vmatpush1.msra.mxu0 %v64
    %79 = vmatprep.subr.mxu0 0.0
    %80 = vmatpush1.msra.mxu0 %v65
    %81 = vmatprep.subr.mxu0 0.0
    %82 = vmatpush1.msra.mxu0 %v66
    %83 = vmatprep.subr.mxu0 0.0
    %84 = vmatpush1.msra.mxu0 0.0
    %85 = vmatprep.subr.mxu0 0.0
    %86 = vmatpush1.msra.mxu0 0.0
    %87 = vmatprep.subr.mxu0 0.0
    %88 = vmatpush1.msra.mxu0 0.0
    %89 = vmatprep.subr.mxu0 0.0
    %90 = vmatpush1.msra.mxu0 0.0
    %91 = vmatprep.subr.mxu0 0.0
    %92 = vmatpush1.msra.mxu0 0.0
    %93 = vmatprep.subr.mxu0 0.0
    %94 = vmatpush1.msra.mxu0 0.0
    %95 = vmatprep.subr.mxu0 0.0
    %96 = vmatpush1.msra.mxu0 0.0
    %97 = vmatprep.subr.mxu0 0.0
    %98 = vmatpush1.msra.mxu0 0.0
    %99 = vmatprep.subr.mxu0 0.0
    %100 = vmatpush1.msra.mxu0 0.0
    %101 = vmatprep.subr.mxu0 0.0
    %102 = vmatpush1.msra.mxu0 0.0
    %103 = vmatprep.subr.mxu0 0.0
    %104 = vmatpush1.msra.mxu0 0.0
    %105 = vmatprep.subr.mxu0 0.0
    %106 = vmatpush1.msra.mxu0 0.0
    %107 = vmatprep.subr.mxu0 0.0
    %108 = vmatpush1.msra.mxu0 0.0
    %109 = vmatprep.subr.mxu0 0.0
    %110 = vmatpush1.msra.mxu0 0.0
    %111 = vmatprep.subr.mxu0 0.0
    %112 = vmatpush1.msra.mxu0 0.0
    %113 = vmatprep.subr.mxu0 0.0
    %114 = vmatpush1.msra.mxu0 0.0
    %115 = vmatprep.subr.mxu0 0.0
    %116 = vmatpush1.msra.mxu0 0.0
    %117 = vmatprep.subr.mxu0 0.0
    %118 = vmatpush1.msra.mxu0 0.0
    %119 = vmatprep.subr.mxu0 0.0
    %120 = vmatpush1.msra.mxu0 0.0
    %121 = vmatprep.subr.mxu0 0.0
    %122 = vmatpush1.msra.mxu0 0.0
    %123 = vmatprep.subr.mxu0 0.0
    %124 = vmatpush1.msra.mxu0 0.0
    %125 = vmatprep.subr.mxu0 0.0
    %126 = vmatpush1.msra.mxu0 0.0
    %127 = vmatprep.subr.mxu0 0.0
    %128 = vmatpush1.msra.mxu0 0.0
    %129 = vmatprep.subr.mxu0 0.0
    %130 = vmatpush1.msra.mxu0 0.0
    %131 = vmatprep.subr.mxu0 0.0
    %132 = vmatpush1.msra.mxu0 0.0
    %133 = vmatprep.subr.mxu0 0.0
    %134 = vmatpush1.msra.mxu0 0.0
    %135 = vmatprep.subr.mxu0 0.0
    %136 = vmatpush1.msra.mxu0 0.0
    %137 = vmatprep.subr.mxu0 0.0
    %138 = vmatpush1.msra.mxu0 0.0
    %139 = vmatprep.mubr.f32.mxu0 0.0
    %140 = vmatmul.mubr.f32.gmra.mrb[0].mxu0 %v70
    %v141 = vpop.f32.mrb[0].mxu0
    %v142 = vadd.f32 0.0, %v141
    %v143 = vpop.f32.mrb[0].mxu0
    %144 = vmatprep.mubr.f32.mxu0 0.0
    %145 = vmatmul.mubr.f32.gmra.mrb[0].mxu0 %v73
    %v146 = vpop.f32.mrb[0].mxu0
    %v147 = vadd.f32 0.0, %v146
    %v148 = vpop.f32.mrb[0].mxu0
    %149 = vdwg.mxu0
    %v150 = vlaneseq
    %v151 = vshrl.u32 %v150, 7
    %v152 = vsub.s32 0, %v151
    %v153 = vrot.slane %v67, %v152
    %v154 = vmul.f32 %v59, %v153
    %v155 = vmul.f32 %v60, %v153
    %v156 = vsel %vm68, %v154, 0.0
    %157 = vadd.xlane.f32.xlu0 %v156
    %v158 = vpop.xlane.xlu0 %157
    %v159 = vsel %vm68, %v155, 0.0
    %160 = vadd.xlane.f32.xlu0 %v159
    %v161 = vpop.xlane.xlu0 %160
    %v162 = vlaneseq
    %v163 = vshrl.u32 %v162, 7
    %v164 = vsub.s32 1, %v163
    %v165 = vrot.slane %v67, %v164
    %v166 = vmul.f32 %v61, %v165
    %v167 = vmul.f32 %v62, %v165
    %v168 = vsel %vm68, %v166, 0.0
    %169 = vadd.xlane.f32.xlu0 %v168
    %v170 = vpop.xlane.xlu0 %169
    %v171 = vsel %vm68, %v167, 0.0
    %172 = vadd.xlane.f32.xlu0 %v171
    %v173 = vpop.xlane.xlu0 %172
    %v175 = vsel %vm68, %v142, 0
    %v178 = vsel %vm68, %v61, 0
    %180 = vmatprep.subr.mxu0 0.0
    %181 = vmatpush1.xpose.msra.mxu0 %v178
    %182 = vmatprep.subr.mxu0 0.0
    %183 = vmatpush1.xpose.msra.mxu0 0.0
    %184 = vmatprep.subr.mxu0 0.0
    %185 = vmatpush1.xpose.msra.mxu0 0.0
    %186 = vmatprep.subr.mxu0 0.0
    %187 = vmatpush1.xpose.msra.mxu0 0.0
    %188 = vmatprep.subr.mxu0 0.0
    %189 = vmatpush1.xpose.msra.mxu0 0.0
    %190 = vmatprep.subr.mxu0 0.0
    %191 = vmatpush1.xpose.msra.mxu0 0.0
    %192 = vmatprep.subr.mxu0 0.0
    %193 = vmatpush1.xpose.msra.mxu0 0.0
    %194 = vmatprep.subr.mxu0 0.0
    %195 = vmatpush1.xpose.msra.mxu0 0.0
    %196 = vmatprep.subr.mxu0 0.0
    %197 = vmatpush1.xpose.msra.mxu0 0.0
    %198 = vmatprep.subr.mxu0 0.0
    %199 = vmatpush1.xpose.msra.mxu0 0.0
    %200 = vmatprep.subr.mxu0 0.0
    %201 = vmatpush1.xpose.msra.mxu0 0.0
    %202 = vmatprep.subr.mxu0 0.0
    %203 = vmatpush1.xpose.msra.mxu0 0.0
    %204 = vmatprep.subr.mxu0 0.0
    %205 = vmatpush1.xpose.msra.mxu0 0.0
    %206 = vmatprep.subr.mxu0 0.0
    %207 = vmatpush1.xpose.msra.mxu0 0.0
    %208 = vmatprep.subr.mxu0 0.0
    %209 = vmatpush1.xpose.msra.mxu0 0.0
    %210 = vmatprep.subr.mxu0 0.0
    %211 = vmatpush1.xpose.msra.mxu0 0.0
    %212 = vmatprep.subr.mxu0 0.0
    %213 = vmatpush1.xpose.msra.mxu0 0.0
    %214 = vmatprep.subr.mxu0 0.0
    %215 = vmatpush1.xpose.msra.mxu0 0.0
    %216 = vmatprep.subr.mxu0 0.0
    %217 = vmatpush1.xpose.msra.mxu0 0.0
    %218 = vmatprep.subr.mxu0 0.0
    %219 = vmatpush1.xpose.msra.mxu0 0.0
    %220 = vmatprep.subr.mxu0 0.0
    %221 = vmatpush1.xpose.msra.mxu0 0.0
    %222 = vmatprep.subr.mxu0 0.0
    %223 = vmatpush1.xpose.msra.mxu0 0.0
    %224 = vmatprep.subr.mxu0 0.0
    %225 = vmatpush1.xpose.msra.mxu0 0.0
    %226 = vmatprep.subr.mxu0 0.0
    %227 = vmatpush1.xpose.msra.mxu0 0.0
    %228 = vmatprep.subr.mxu0 0.0
    %229 = vmatpush1.xpose.msra.mxu0 0.0
    %230 = vmatprep.subr.mxu0 0.0
    %231 = vmatpush1.xpose.msra.mxu0 0.0
    %232 = vmatprep.subr.mxu0 0.0
    %233 = vmatpush1.xpose.msra.mxu0 0.0
    %234 = vmatprep.subr.mxu0 0.0
    %235 = vmatpush1.xpose.msra.mxu0 0.0
    %236 = vmatprep.subr.mxu0 0.0
    %237 = vmatpush1.xpose.msra.mxu0 0.0
    %238 = vmatprep.subr.mxu0 0.0
    %239 = vmatpush1.xpose.msra.mxu0 0.0
    %240 = vmatprep.subr.mxu0 0.0
    %241 = vmatpush1.xpose.msra.mxu0 0.0
    %242 = vmatprep.subr.mxu0 0.0
    %243 = vmatpush1.xpose.msra.mxu0 0.0
    %244 = vmatprep.mubr.f32.mxu0 0.0
    %245 = vmatmul.mubr.f32.gmra.mrb[0].mxu0 %v175
    %v246 = vpop.f32.mrb[0].mxu0
    %v247 = vadd.f32 %v158, %v246
    %v248 = vpop.f32.mrb[0].mxu0
    %249 = vdwg.mxu0
    %v251 = vsel %vm68, %v147, 0
    %v254 = vsel %vm68, %v62, 0
    %256 = vmatprep.subr.mxu0 0.0
    %257 = vmatpush1.xpose.msra.mxu0 %v254
    %258 = vmatprep.subr.mxu0 0.0
    %259 = vmatpush1.xpose.msra.mxu0 0.0
    %260 = vmatprep.subr.mxu0 0.0
    %261 = vmatpush1.xpose.msra.mxu0 0.0
    %262 = vmatprep.subr.mxu0 0.0
    %263 = vmatpush1.xpose.msra.mxu0 0.0
    %264 = vmatprep.subr.mxu0 0.0
    %265 = vmatpush1.xpose.msra.mxu0 0.0
    %266 = vmatprep.subr.mxu0 0.0
    %267 = vmatpush1.xpose.msra.mxu0 0.0
    %268 = vmatprep.subr.mxu0 0.0
    %269 = vmatpush1.xpose.msra.mxu0 0.0
    %270 = vmatprep.subr.mxu0 0.0
    %271 = vmatpush1.xpose.msra.mxu0 0.0
    %272 = vmatprep.subr.mxu0 0.0
    %273 = vmatpush1.xpose.msra.mxu0 0.0
    %274 = vmatprep.subr.mxu0 0.0
    %275 = vmatpush1.xpose.msra.mxu0 0.0
    %276 = vmatprep.subr.mxu0 0.0
    %277 = vmatpush1.xpose.msra.mxu0 0.0
    %278 = vmatprep.subr.mxu0 0.0
    %279 = vmatpush1.xpose.msra.mxu0 0.0
    %280 = vmatprep.subr.mxu0 0.0
    %281 = vmatpush1.xpose.msra.mxu0 0.0
    %282 = vmatprep.subr.mxu0 0.0
    %283 = vmatpush1.xpose.msra.mxu0 0.0
    %284 = vmatprep.subr.mxu0 0.0
    %285 = vmatpush1.xpose.msra.mxu0 0.0
    %286 = vmatprep.subr.mxu0 0.0
    %287 = vmatpush1.xpose.msra.mxu0 0.0
    %288 = vmatprep.subr.mxu0 0.0
    %289 = vmatpush1.xpose.msra.mxu0 0.0
    %290 = vmatprep.subr.mxu0 0.0
    %291 = vmatpush1.xpose.msra.mxu0 0.0
    %292 = vmatprep.subr.mxu0 0.0
    %293 = vmatpush1.xpose.msra.mxu0 0.0
    %294 = vmatprep.subr.mxu0 0.0
    %295 = vmatpush1.xpose.msra.mxu0 0.0
    %296 = vmatprep.subr.mxu0 0.0
    %297 = vmatpush1.xpose.msra.mxu0 0.0
    %298 = vmatprep.subr.mxu0 0.0
    %299 = vmatpush1.xpose.msra.mxu0 0.0
    %300 = vmatprep.subr.mxu0 0.0
    %301 = vmatpush1.xpose.msra.mxu0 0.0
    %302 = vmatprep.subr.mxu0 0.0
    %303 = vmatpush1.xpose.msra.mxu0 0.0
    %304 = vmatprep.subr.mxu0 0.0
    %305 = vmatpush1.xpose.msra.mxu0 0.0
    %306 = vmatprep.subr.mxu0 0.0
    %307 = vmatpush1.xpose.msra.mxu0 0.0
    %308 = vmatprep.subr.mxu0 0.0
    %309 = vmatpush1.xpose.msra.mxu0 0.0
    %310 = vmatprep.subr.mxu0 0.0
    %311 = vmatpush1.xpose.msra.mxu0 0.0
    %312 = vmatprep.subr.mxu0 0.0
    %313 = vmatpush1.xpose.msra.mxu0 0.0
    %314 = vmatprep.subr.mxu0 0.0
    %315 = vmatpush1.xpose.msra.mxu0 0.0
    %316 = vmatprep.subr.mxu0 0.0
    %317 = vmatpush1.xpose.msra.mxu0 0.0
    %318 = vmatprep.subr.mxu0 0.0
    %319 = vmatpush1.xpose.msra.mxu0 0.0
    %320 = vmatprep.mubr.f32.mxu0 0.0
    %321 = vmatmul.mubr.f32.gmra.mrb[0].mxu0 %v251
    %v322 = vpop.f32.mrb[0].mxu0
    %v323 = vadd.f32 %v161, %v322
    %v324 = vpop.f32.mrb[0].mxu0
    %325 = vdwg.mxu0
    %v328 = vlaneseq
    %v329 = vand.u32 %v328, 127
    %v330 = vlaneseq
    %v331 = vshrl.u32 %v330, 7
    %v332 = vsub.s32 %v329, %v331
    %v333 = vrot.slane %v170, %v332
    %v334 = vlaneseq
    %v335 = vshrl.u32 %v334, 7
    %v336 = vsub.s32 %v329, %v335
    %v337 = vrot.slane %v173, %v336
    %vm338 = vcmask 1041409
    %vm339 = vcmask 1042434
    %v340 = vsel %vm339, %v333, %v333
    %vm341 = vcmask 1043459
    %v342 = vsel %vm341, %v333, %v340
    %vm343 = vcmask 1044484
    %v344 = vsel %vm343, %v333, %v342
    %vm345 = vcmask 1045509
    %v346 = vsel %vm345, %v333, %v344
    %vm347 = vcmask 1046534
    %v348 = vsel %vm347, %v333, %v346
    %vm349 = vcmask 1047559
    %v350 = vsel %vm349, %v333, %v348
    %v351 = vsel %vm339, %v337, %v337
    %v352 = vsel %vm341, %v337, %v351
    %v353 = vsel %vm343, %v337, %v352
    %v354 = vsel %vm345, %v337, %v353
    %v355 = vsel %vm347, %v337, %v354
    %v356 = vsel %vm349, %v337, %v355
    %v359 = vadd.f32 %v247, %v350
    %v360 = vadd.f32 %v323, %v356
    %v361 = vmul.f32 %v359, 0.0078125
    %v362 = vmul.f32 %v360, 0.0078125
    %vm363 = vcmask 64512
    %v364 = vsel %vm363, %v361, -inf
    %365 = vmax.xlane.f32.xlu0 %v364
    %v366 = vpop.xlane.xlu0 %365
    %v367 = vsel %vm363, %v362, -inf
    %368 = vmax.xlane.f32.xlu0 %v367
    %v369 = vpop.xlane.xlu0 %368
    %v370 = vrot.slane %v366, 4
    %v371 = vmax.f32 %v366, %v370
    %v372 = vrot.slane %v371, 2
    %v373 = vmax.f32 %v371, %v372
    %v374 = vrot.slane %v373, 1
    %v375 = vmax.f32 %v373, %v374
    %v376 = vrot.slane %v369, 4
    %v377 = vmax.f32 %v369, %v376
    %v378 = vrot.slane %v377, 2
    %v379 = vmax.f32 %v377, %v378
    %v380 = vrot.slane %v379, 1
    %v381 = vmax.f32 %v379, %v380
    %v382 = vsub.f32 %v361, %v375
    %v383 = vsub.f32 %v362, %v381
    %v384 = vmul.f32 %v382, 1.442695
    %v385 = vpow.pop %v384
    %v386 = vmul.f32 %v383, 1.442695
    %v387 = vpow.pop %v386
    %v388 = vsel %vm363, %v385, 0.0
    %389 = vadd.xlane.f32.xlu0 %v388
    %v390 = vpop.xlane.xlu0 %389
    %v391 = vsel %vm363, %v387, 0.0
    %392 = vadd.xlane.f32.xlu0 %v391
    %v393 = vpop.xlane.xlu0 %392
    %v394 = vrot.slane %v390, 4
    %v395 = vadd.f32 %v390, %v394
    %v396 = vrot.slane %v395, 2
    %v397 = vadd.f32 %v395, %v396
    %v398 = vrot.slane %v397, 1
    %v399 = vadd.f32 %v397, %v398
    %v400 = vrot.slane %v393, 4
    %v401 = vadd.f32 %v393, %v400
    %v402 = vrot.slane %v401, 2
    %v403 = vadd.f32 %v401, %v402
    %v404 = vrot.slane %v403, 1
    %v405 = vadd.f32 %v403, %v404
    %v406 = vrcp.pop %v399
    %v407 = vrcp.pop %v405
    %v408 = vmul.f32 %v385, %v406
    %v409 = vmul.f32 %v387, %v407
    %v410 = vsel %vm363, %v408, 0.0
    %v411 = vrot.slane %v410, 4
    %v412 = vadd.f32 %v410, %v411
    %v413 = vrot.slane %v412, 2
    %v414 = vadd.f32 %v412, %v413
    %v415 = vrot.slane %v414, 1
    %v416 = vadd.f32 %v414, %v415
    %v417 = vsel %vm363, %v409, 0.0
    %v418 = vrot.slane %v417, 4
    %v419 = vadd.f32 %v417, %v418
    %v420 = vrot.slane %v419, 2
    %v421 = vadd.f32 %v419, %v420
    %v422 = vrot.slane %v421, 1
    %v423 = vadd.f32 %v421, %v422
    %424 = vadd.xlane.f32.xlu0 %v410
    %v425 = vpop.xlane.xlu0 %424
    %426 = vadd.xlane.f32.xlu0 %v417
    %v427 = vpop.xlane.xlu0 %426
    %429 = vbcast.lane.b32.xlu0 %v416, 256
    %v430 = vpop.permute.xlu0 %429
    %432 = vbcast.lane.b32.xlu0 %v423, 256
    %v433 = vpop.permute.xlu0 %432
    %v434 = vmul.f32 %v430, %v59
    %v435 = vmul.f32 %v433, %v60
    %v436 = vsel %vm68, %v434, 0.0
    %v437 = vrot.slane %v436, 4
    %v438 = vadd.f32 %v436, %v437
    %v439 = vrot.slane %v438, 2
    %v440 = vadd.f32 %v438, %v439
    %v441 = vrot.slane %v440, 1
    %v442 = vadd.f32 %v440, %v441
    %v443 = vsel %vm68, %v435, 0.0
    %v444 = vrot.slane %v443, 4
    %v445 = vadd.f32 %v443, %v444
    %v446 = vrot.slane %v445, 2
    %v447 = vadd.f32 %v445, %v446
    %v448 = vrot.slane %v447, 1
    %v449 = vadd.f32 %v447, %v448
    %v450 = vmul.f32 %v425, %v61
    %v451 = vmul.f32 %v427, %v62
    %v452 = vsel %vm68, %v450, 0.0
    %v453 = vrot.slane %v452, 4
    %v454 = vadd.f32 %v452, %v453
    %v455 = vrot.slane %v454, 2
    %v456 = vadd.f32 %v454, %v455
    %v457 = vrot.slane %v456, 1
    %v458 = vadd.f32 %v456, %v457
    %v459 = vsel %vm68, %v451, 0.0
    %v460 = vrot.slane %v459, 4
    %v461 = vadd.f32 %v459, %v460
    %v462 = vrot.slane %v461, 2
    %v463 = vadd.f32 %v461, %v462
    %v464 = vrot.slane %v463, 1
    %v465 = vadd.f32 %v463, %v464
    %v466 = vadd.f32 %v442, %v458
    %v467 = vadd.f32 %v449, %v465
    %v470 = vsel %vm338, %v467, %v466
    %vm472 = vcmask 254976
    %473 = vst.msk [vmem:[#allocation8] sm:$0x3] %vm472, %v470
    // Predicated region
    $region30: #{tpu_custom_call.1} parent=1 // pred_check
      _
    $region31: #{tpu_custom_call.1} parent=1 // pred_check_branch
      %475 = sbr.rel (0) target = $region33
    $region32: #{tpu_custom_call.1} parent=1 // pred_region
      %s477 = ssub.s32 32, 32
      %478 = vsyncadd [#allocation4], %s477
      %s480 = sshll.u32 [#allocation8], 4
      %s481 = int_to_ptr.vmem [resolvable:$true] %s480
      %483 = dma.vmem_to_hbm [thread:$0]  %s481, 32, %s4, [#allocation4]
    $region33: #{tpu_custom_call.1} parent=1 // pred_fallthru
      _
    // Predicated region
    $region34: #{tpu_custom_call.1} parent=1 // pred_check
      _
    $region35: #{tpu_custom_call.1} parent=1 // pred_check_branch
      %485 = sbr.rel (0) target = $region37
    $region36: #{tpu_custom_call.1} parent=1 // pred_region
      %486 = dma.done [#allocation4], 32
    $region37: #{tpu_custom_call.1} parent=1 // pred_fallthru
      _
    %487 = vsyncpa [#allocation3], 1
    %488 = vsyncpa [#allocation6], 1
    %489 = vsyncpa [#allocation4], 1

</llo_original>
